<compile_context>
chip_gen: v5e
topology: v5e:2x2
jax: 0.10.0
libtpu: 0.0.40
codegen_flags: <defaults>
</compile_context>

<pallas_src>
import math

import jax
import jax.numpy as jnp
from jax import lax
from jax.experimental import pallas as pl
from jax.experimental.pallas import tpu as pltpu


def _round_up(v, m):
    return ((v + m - 1) // m) * m


def _noisy_linear_kernel(x_ref, wmu_ref, wsig_ref, ein_ref, eout_ref, b_ref,
                         o_ref):
    k = pl.program_id(2)

    @pl.when(k == 0)
    def _init():
        # Output tile is resident across the K axis; seed it with the bias so
        # no finalize pass is needed.
        o_ref[...] = jnp.broadcast_to(b_ref[...], o_ref.shape).astype(o_ref.dtype)

    x = x_ref[...]                                            # (tm, tk)

    # Weights stay in native (out, in) layout: contract the last dim of both
    # operands (x @ W^T) so no transpose copy is ever made.
    dn = (((1,), (1,)), ((), ()))
    acc_mu = lax.dot_general(x, wmu_ref[...], dn,
                             preferred_element_type=jnp.float32)   # (tm, tn)

    # Rank-1 factorized noise:
    #   x @ (Wsig * outer(eps_out, eps_in))^T == ((x * eps_in) @ Wsig^T) * eps_out
    xs = x * ein_ref[...]                                     # (tm, tk)*(1, tk)
    acc_sig = lax.dot_general(xs, wsig_ref[...], dn,
                              preferred_element_type=jnp.float32)  # (tm, tn)

    o_ref[...] += acc_mu + acc_sig * eout_ref[...]


def noisy_linear(x, weight_mu, weight_sigma, bias_mu, bias_sigma,
                 eps_in, eps_out, *, tm=512, tn=512, tk=512):
    """NoisyLinear forward.

    x:            (B, in_features)
    weight_mu:    (out_features, in_features)
    weight_sigma: (out_features, in_features)
    bias_mu:      (out_features,)
    bias_sigma:   (out_features,)
    eps_in:       (in_features,)   factorized noise (weight_epsilon = outer(eps_out, eps_in))
    eps_out:      (out_features,)  factorized noise (== bias_epsilon)
    """
    B, K = x.shape
    N, K2 = weight_mu.shape
    assert K2 == K
    out_dtype = x.dtype

    # ---- tile selection ---------------------------------------------------
    tm_full = _round_up(B, 8)
    tn_full = _round_up(N, 128)
    tk_full = _round_up(K, 128)
    tm = min(tm, tm_full)
    tn = min(tn, tn_full)
    tk = min(tk, tk_full)

    # If the whole batch fits a single M tile, split N into >= 2 tiles so both
    # TensorCores on v7x have work along a "parallel" axis.
    if tm >= tm_full and tn >= tn_full and tn_full >= 256:
        tn = max(128, ((tn_full // 2) // 128) * 128)

    Bp = _round_up(B, tm)
    Kp = _round_up(K, tk)
    Np = _round_up(N, tn)

    # ---- padding (zero pads along K are contribution-free; padded N columns
    # are sliced off at the end). No transposes of the big weight matrices.
    x_p = x if (Bp, Kp) == (B, K) else jnp.pad(x, ((0, Bp - B), (0, Kp - K)))
    if (Np, Kp) != (N, K):
        pad_w = ((0, Np - N), (0, Kp - K))
        wmu_p = jnp.pad(weight_mu, pad_w)
        wsig_p = jnp.pad(weight_sigma, pad_w)
    else:
        wmu_p, wsig_p = weight_mu, weight_sigma

    ein_row = eps_in.reshape(1, K).astype(jnp.float32)
    eout_row = eps_out.reshape(1, N).astype(jnp.float32)
    # Fuse the O(out) bias math once in the wrapper; single lane-dense row.
    b_row = (bias_mu + bias_sigma * eps_out).reshape(1, N).astype(jnp.float32)
    if Kp != K:
        ein_row = jnp.pad(ein_row, ((0, 0), (0, Kp - K)))
    if Np != N:
        eout_row = jnp.pad(eout_row, ((0, 0), (0, Np - N)))
        b_row = jnp.pad(b_row, ((0, 0), (0, Np - N)))

    grid = (Bp // tm, Np // tn, Kp // tk)

    # VMEM budget: double-buffered inputs (x, 2 weights, 3 rows) + output tile
    # + matmul/elementwise temporaries, clamped so it is safe on v7x (64 MiB).
    f32b = 4
    buffered = 2 * (tm * tk + 2 * tn * tk + 8 * tk + 2 * 8 * tn + tm * tn)
    temps = tm * tk + 2 * tm * tn
    vmem_limit = int(min(max(f32b * (buffered + temps) + (4 << 20), 16 << 20),
                         48 << 20))

    out = pl.pallas_call(
        _noisy_linear_kernel,
        out_shape=jax.ShapeDtypeStruct((Bp, Np), jnp.float32),
        grid_spec=pltpu.PrefetchScalarGridSpec(
            num_scalar_prefetch=0,
            grid=grid,
            in_specs=[
                pl.BlockSpec((tm, tk), lambda i, j, k: (i, k)),   # x
                pl.BlockSpec((tn, tk), lambda i, j, k: (j, k)),   # weight_mu (out,in)
                pl.BlockSpec((tn, tk), lambda i, j, k: (j, k)),   # weight_sigma (out,in)
                pl.BlockSpec((1, tk), lambda i, j, k: (0, k)),    # eps_in row
                pl.BlockSpec((1, tn), lambda i, j, k: (0, j)),    # eps_out row
                pl.BlockSpec((1, tn), lambda i, j, k: (0, j)),    # fused bias row
            ],
            out_specs=pl.BlockSpec((tm, tn), lambda i, j, k: (i, j)),
        ),
        compiler_params=pltpu.CompilerParams(
            dimension_semantics=("parallel", "parallel", "arbitrary"),
            vmem_limit_bytes=vmem_limit,
        ),
    )(x_p.astype(jnp.float32), wmu_p.astype(jnp.float32),
      wsig_p.astype(jnp.float32), ein_row, eout_row, b_row)

    return out[:B, :N].astype(out_dtype)


def scale_noise(key, size):
    """Factorized gaussian noise: sign(x) * sqrt(|x|), x ~ N(0,1)."""
    x = jax.random.normal(key, (size,), dtype=jnp.float32)
    return jnp.sign(x) * jnp.sqrt(jnp.abs(x))


def init_noisy_linear_params(key, in_features, out_features, std_init=0.5):
    """Deterministic re-implementation of reset_parameters() + reset_noise()."""
    k_wmu, k_bmu, k_ein, k_eout = jax.random.split(key, 4)
    mu_range = 1.0 / math.sqrt(in_features)

    weight_mu = jax.random.uniform(
        k_wmu, (out_features, in_features), jnp.float32, -mu_range, mu_range)
    weight_sigma = jnp.full((out_features, in_features),
                            std_init / math.sqrt(in_features), jnp.float32)
    bias_mu = jax.random.uniform(
        k_bmu, (out_features,), jnp.float32, -mu_range, mu_range)
    bias_sigma = jnp.full((out_features,),
                          std_init / math.sqrt(out_features), jnp.float32)

    eps_in = scale_noise(k_ein, in_features)
    eps_out = scale_noise(k_eout, out_features)
    weight_epsilon = jnp.outer(eps_out, eps_in)   # epsilon_out.ger(epsilon_in)
    bias_epsilon = eps_out

    return dict(weight_mu=weight_mu, weight_sigma=weight_sigma,
                bias_mu=bias_mu, bias_sigma=bias_sigma,
                eps_in=eps_in, eps_out=eps_out,
                weight_epsilon=weight_epsilon, bias_epsilon=bias_epsilon)


if __name__ == "__main__":
    key = jax.random.PRNGKey(0)
    k_param, k_x = jax.random.split(key)

    batch, in_features, out_features = 8, 32, 32
    params = init_noisy_linear_params(k_param, in_features, out_features)
    x = jax.random.normal(k_x, (batch, in_features), dtype=jnp.float32)

    y = noisy_linear(x, params["weight_mu"], params["weight_sigma"],
                     params["bias_mu"], params["bias_sigma"],
                     params["eps_in"], params["eps_out"])
    y = jax.block_until_ready(y)

    # Pure-JAX reference, exactly mirroring the PyTorch forward.
    w_eff = params["weight_mu"] + params["weight_sigma"] * params["weight_epsilon"]
    b_eff = params["bias_mu"] + params["bias_sigma"] * params["bias_epsilon"]
    y_ref = x @ w_eff.T + b_eff

    assert y.shape == (batch, out_features)
    err = float(jnp.max(jnp.abs(y - y_ref)))
    assert jnp.allclose(y, y_ref, atol=1e-5, rtol=1e-5), err

    print("KERNEL_OK")
</pallas_src>

<mosaic_0001>
module attributes {stable_mosaic.version = 11 : i64} {
  func.func @_noisy_linear_kernel(%arg0: i32, %arg1: i32, %arg2: i32, %arg3: memref<8x128xf32, #tpu.memory_space<vmem>>, %arg4: memref<128x128xf32, #tpu.memory_space<vmem>>, %arg5: memref<128x128xf32, #tpu.memory_space<vmem>>, %arg6: memref<1x128xf32, #tpu.memory_space<vmem>>, %arg7: memref<1x128xf32, #tpu.memory_space<vmem>>, %arg8: memref<1x128xf32, #tpu.memory_space<vmem>>, %arg9: memref<8x128xf32, #tpu.memory_space<vmem>>) attributes {dimension_semantics = [#tpu.dimension_semantics<parallel>, #tpu.dimension_semantics<parallel>, #tpu.dimension_semantics<arbitrary>], iteration_bounds = array<i64: 1, 1, 1>, scalar_prefetch = 0 : i64, scratch_operands = 0 : i64, tpu.core_type = #tpu.core_type<tc>, window_params = [{transform_indices = @transform_0, window_bounds = array<i64: 8, 128>}, {transform_indices = @transform_1, window_bounds = array<i64: 128, 128>}, {transform_indices = @transform_2, window_bounds = array<i64: 128, 128>}, {transform_indices = @transform_3, window_bounds = array<i64: 1, 128>}, {transform_indices = @transform_4, window_bounds = array<i64: 1, 128>}, {transform_indices = @transform_5, window_bounds = array<i64: 1, 128>}, {transform_indices = @transform_6, window_bounds = array<i64: 8, 128>}]} {
    %c0_i32 = arith.constant 0 : i32
    %0 = arith.cmpi eq, %arg2, %c0_i32 : i32
    %1 = arith.extui %0 : i1 to i32
    %c0_i32_0 = arith.constant 0 : i32
    %2 = arith.cmpi ne, %1, %c0_i32_0 : i32
    scf.if %2 {
      %c0_15 = arith.constant 0 : index
      %c0_16 = arith.constant 0 : index
      %18 = vector.load %arg8[%c0_15, %c0_16] : memref<1x128xf32, #tpu.memory_space<vmem>>, vector<1x128xf32>
      %19 = vector.shape_cast %18 : vector<1x128xf32> to vector<1x128xf32>
      %20 = vector.broadcast %19 : vector<1x128xf32> to vector<8x128xf32>
      %c0_17 = arith.constant 0 : index
      %c0_18 = arith.constant 0 : index
      %21 = vector.load %arg9[%c0_17, %c0_18] : memref<8x128xf32, #tpu.memory_space<vmem>>, vector<8x128xf32>
      tpu.vector_store %arg9[%c0_17, %c0_18], %20 {strides = array<i32>} : memref<8x128xf32, #tpu.memory_space<vmem>>, vector<8x128xf32>,
    } else {
    }
    %c0 = arith.constant 0 : index
    %c0_1 = arith.constant 0 : index
    %3 = vector.load %arg3[%c0, %c0_1] : memref<8x128xf32, #tpu.memory_space<vmem>>, vector<8x128xf32>
    %c0_2 = arith.constant 0 : index
    %c0_3 = arith.constant 0 : index
    %4 = vector.load %arg4[%c0_2, %c0_3] : memref<128x128xf32, #tpu.memory_space<vmem>>, vector<128x128xf32>
    %cst = arith.constant dense<0.000000e+00> : vector<8x128xf32>
    %5 = tpu.matmul %3, %4, %cst {dimension_numbers = #tpu.dot_dimension_numbers<[1], [1], [0], [0], [0, 0, 1, 0], [], []>} : vector<8x128xf32>, vector<128x128xf32>, vector<8x128xf32> -> vector<8x128xf32>
    %c0_4 = arith.constant 0 : index
    %c0_5 = arith.constant 0 : index
    %6 = vector.load %arg6[%c0_4, %c0_5] : memref<1x128xf32, #tpu.memory_space<vmem>>, vector<1x128xf32>
    %7 = vector.broadcast %6 : vector<1x128xf32> to vector<8x128xf32>
    %8 = arith.mulf %3, %7 : vector<8x128xf32>
    %c0_6 = arith.constant 0 : index
    %c0_7 = arith.constant 0 : index
    %9 = vector.load %arg5[%c0_6, %c0_7] : memref<128x128xf32, #tpu.memory_space<vmem>>, vector<128x128xf32>
    %cst_8 = arith.constant dense<0.000000e+00> : vector<8x128xf32>
    %10 = tpu.matmul %8, %9, %cst_8 {dimension_numbers = #tpu.dot_dimension_numbers<[1], [1], [0], [0], [0, 0, 1, 0], [], []>} : vector<8x128xf32>, vector<128x128xf32>, vector<8x128xf32> -> vector<8x128xf32>
    %c0_9 = arith.constant 0 : index
    %c0_10 = arith.constant 0 : index
    %11 = vector.load %arg9[%c0_9, %c0_10] : memref<8x128xf32, #tpu.memory_space<vmem>>, vector<8x128xf32>
    %c0_11 = arith.constant 0 : index
    %c0_12 = arith.constant 0 : index
    %12 = vector.load %arg7[%c0_11, %c0_12] : memref<1x128xf32, #tpu.memory_space<vmem>>, vector<1x128xf32>
    %13 = vector.broadcast %12 : vector<1x128xf32> to vector<8x128xf32>
    %14 = arith.mulf %10, %13 : vector<8x128xf32>
    %15 = arith.addf %5, %14 : vector<8x128xf32>
    %16 = arith.addf %11, %15 : vector<8x128xf32>
    %c0_13 = arith.constant 0 : index
    %c0_14 = arith.constant 0 : index
    %17 = vector.load %arg9[%c0_13, %c0_14] : memref<8x128xf32, #tpu.memory_space<vmem>>, vector<8x128xf32>
    tpu.vector_store %arg9[%c0_13, %c0_14], %16 {strides = array<i32>} : memref<8x128xf32, #tpu.memory_space<vmem>>, vector<8x128xf32>,
    return
  }
  func.func @transform_0(%arg0: i32, %arg1: i32, %arg2: i32) -> (i32, i32) {
    %c0_i32 = arith.constant 0 : i32
    return %arg0, %arg2 : i32, i32
  }
  func.func @transform_1(%arg0: i32, %arg1: i32, %arg2: i32) -> (i32, i32) {
    %c0_i32 = arith.constant 0 : i32
    return %arg1, %arg2 : i32, i32
  }
  func.func @transform_2(%arg0: i32, %arg1: i32, %arg2: i32) -> (i32, i32) {
    %c0_i32 = arith.constant 0 : i32
    return %arg1, %arg2 : i32, i32
  }
  func.func @transform_3(%arg0: i32, %arg1: i32, %arg2: i32) -> (i32, i32) {
    %c0_i32 = arith.constant 0 : i32
    %c0_i32_0 = arith.constant 0 : i32
    return %c0_i32, %arg2 : i32, i32
  }
  func.func @transform_4(%arg0: i32, %arg1: i32, %arg2: i32) -> (i32, i32) {
    %c0_i32 = arith.constant 0 : i32
    %c0_i32_0 = arith.constant 0 : i32
    return %c0_i32, %arg1 : i32, i32
  }
  func.func @transform_5(%arg0: i32, %arg1: i32, %arg2: i32) -> (i32, i32) {
    %c0_i32 = arith.constant 0 : i32
    %c0_i32_0 = arith.constant 0 : i32
    return %c0_i32, %arg1 : i32, i32
  }
  func.func @transform_6(%arg0: i32, %arg1: i32, %arg2: i32) -> (i32, i32) {
    %c0_i32 = arith.constant 0 : i32
    return %arg0, %arg1 : i32, i32
  }
}

</mosaic_0001>

<llo_original>
// kernel: tpu_custom_call.1
$region0: #{tpu_custom_call.1}
  #allocation0 [shape = 'u32[]', space=smem, size = 0x4, offset = 0x4, fixed_abs, tag = 'smem constant byte address 0x4 - core index']
  #allocation1 [shape = 'u32[72,128]{1,0:T(1,128)}', space=vmem, size = 0x9000, scoped, tag = 'internal scratch']
  %s0 = inlined_call_operand.hbm [shape: f32[8,128], index: 0, kind: input, shape index: {}]
  %s1 = inlined_call_operand.hbm [shape: f32[128,128], index: 1, kind: input, shape index: {}]
  %s2 = inlined_call_operand.hbm [shape: f32[128,128], index: 2, kind: input, shape index: {}]
  %s3 = inlined_call_operand.vmem [shape: f32[1,128], index: 3, kind: input, shape index: {}]
  %s4 = inlined_call_operand.vmem [shape: f32[1,128], index: 4, kind: input, shape index: {}]
  %s5 = inlined_call_operand.vmem [shape: f32[1,128], index: 5, kind: input, shape index: {}]
  %s6 = inlined_call_operand.hbm [shape: f32[8,128], index: 6, kind: output, shape index: {}]
  %s7 = sld [smem:[#allocation0]]
  $region50: #{tpu_custom_call.1} parent=0
    _
  %s9 = ssub.s32 1, %s7
  %s10 = scalar_select 0, %s9, %s7
  $region1: #{tpu_custom_call.1} parent=0
    #allocation2 [shape = 'u8[4096]{0}', space=vmem, size = 0x1000, scoped, tag = 'input window, operand 0, single buffered']
    #allocation3 [shape = 's32[1]{0}', space=sflag, size = 0x4, scoped, tag = 'scoped memory for tpu_custom_call.1']
    #allocation4 [shape = 's32[1]{0}', space=sflag, size = 0x4, scoped, tag = 'scoped memory for tpu_custom_call.1']
    #allocation5 [shape = 'u8[65536]{0}', space=vmem, size = 0x10000, scoped, tag = 'input window, operand 1, single buffered']
    #allocation6 [shape = 's32[1]{0}', space=sflag, size = 0x4, scoped, tag = 'scoped memory for tpu_custom_call.1']
    #allocation7 [shape = 'u8[65536]{0}', space=vmem, size = 0x10000, scoped, tag = 'input window, operand 2, single buffered']
    #allocation8 [shape = 'u8[4096]{0}', space=vmem, size = 0x1000, scoped, tag = 'output window, operand 0, single buffered']
    %11 = vsyncpa [#allocation3], 0
    %12 = vsyncpa [#allocation6], 0
    %13 = vsyncpa [#allocation4], 0
    // Predicated region
    $region2: #{tpu_custom_call.1} parent=1 // pred_check
      _
    $region3: #{tpu_custom_call.1} parent=1 // pred_check_branch
      %15 = sbr.rel (0) target = $region5
    $region4: #{tpu_custom_call.1} parent=1 // pred_region
      %17 = vsyncadd [#allocation3], 0
      %s19 = sshll.u32 %s0, 4
      %s20 = int_to_ptr.hbm [resolvable:$true] %s19
      %s21 = sshll.u32 [#allocation2], 4
      %s22 = int_to_ptr.vmem [resolvable:$true] %s21
      %24 = dma.hbm_to_vmem [thread:$0]  %s20, 128, %s22, [#allocation3]
    $region5: #{tpu_custom_call.1} parent=1 // pred_fallthru
      _
    // Predicated region
    $region6: #{tpu_custom_call.1} parent=1 // pred_check
      _
    $region7: #{tpu_custom_call.1} parent=1 // pred_check_branch
      %26 = sbr.rel (0) target = $region9
    $region8: #{tpu_custom_call.1} parent=1 // pred_region
      %28 = vsyncadd [#allocation6], 0
      %s29 = sshll.u32 %s1, 4
      %s30 = int_to_ptr.hbm [resolvable:$true] %s29
      %s31 = sshll.u32 [#allocation5], 4
      %s32 = int_to_ptr.vmem [resolvable:$true] %s31
      %37 = dma.hbm_to_vmem [thread:$0]  %s30, 2048, %s32, [#allocation6], 128, 128, 8
    $region9: #{tpu_custom_call.1} parent=1 // pred_fallthru
      _
    // Predicated region
    $region10: #{tpu_custom_call.1} parent=1 // pred_check
      _
    $region11: #{tpu_custom_call.1} parent=1 // pred_check_branch
      %39 = sbr.rel (0) target = $region13
    $region12: #{tpu_custom_call.1} parent=1 // pred_region
      %41 = vsyncadd [#allocation6], 0
      %s42 = sshll.u32 %s2, 4
      %s43 = int_to_ptr.hbm [resolvable:$true] %s42
      %s44 = sshll.u32 [#allocation7], 4
      %s45 = int_to_ptr.vmem [resolvable:$true] %s44
      %50 = dma.hbm_to_vmem [thread:$0]  %s43, 2048, %s45, [#allocation6], 128, 128, 8
    $region13: #{tpu_custom_call.1} parent=1 // pred_fallthru
      _
    // Predicated region
    $region14: #{tpu_custom_call.1} parent=1 // pred_check
      _
    $region15: #{tpu_custom_call.1} parent=1 // pred_check_branch
      %52 = sbr.rel (0) target = $region17
    $region16: #{tpu_custom_call.1} parent=1 // pred_region
      _
    $region17: #{tpu_custom_call.1} parent=1 // pred_fallthru
      _
    // Predicated region
    $region18: #{tpu_custom_call.1} parent=1 // pred_check
      _
    $region19: #{tpu_custom_call.1} parent=1 // pred_check_branch
      %54 = sbr.rel (0) target = $region21
    $region20: #{tpu_custom_call.1} parent=1 // pred_region
      _
    $region21: #{tpu_custom_call.1} parent=1 // pred_fallthru
      _
    // Predicated region
    $region22: #{tpu_custom_call.1} parent=1 // pred_check
      _
    $region23: #{tpu_custom_call.1} parent=1 // pred_check_branch
      %56 = sbr.rel (0) target = $region25
    $region24: #{tpu_custom_call.1} parent=1 // pred_region
      _
    $region25: #{tpu_custom_call.1} parent=1 // pred_fallthru
      _
    // Predicated region
    $region26: #{tpu_custom_call.1} parent=1 // pred_check
      _
    $region27: #{tpu_custom_call.1} parent=1 // pred_check_branch
      %58 = sbr.rel (0) target = $region29
    $region28: #{tpu_custom_call.1} parent=1 // pred_region
      %60 = dma.done [#allocation3], 128
    $region29: #{tpu_custom_call.1} parent=1 // pred_fallthru
      _
    // Predicated region
    $region30: #{tpu_custom_call.1} parent=1 // pred_check
      _
    $region31: #{tpu_custom_call.1} parent=1 // pred_check_branch
      %62 = sbr.rel (0) target = $region33
    $region32: #{tpu_custom_call.1} parent=1 // pred_region
      %64 = dma.done [#allocation6], 2048
    $region33: #{tpu_custom_call.1} parent=1 // pred_fallthru
      _
    // Predicated region
    $region34: #{tpu_custom_call.1} parent=1 // pred_check
      _
    $region35: #{tpu_custom_call.1} parent=1 // pred_check_branch
      %66 = sbr.rel (0) target = $region37
    $region36: #{tpu_custom_call.1} parent=1 // pred_region
      %68 = dma.done [#allocation6], 2048
    $region37: #{tpu_custom_call.1} parent=1 // pred_fallthru
      _
    %p69 = scmp.eq.s32.totalorder 0, 0
    // Predicated region
    $region38: #{tpu_custom_call.1} parent=1 // pred_check
      %p70 = pneg %p69
    $region39: #{tpu_custom_call.1} parent=1 // pred_check_branch
      %72 = sbr.rel (%p70) target = $region41
    $region40: #{tpu_custom_call.1} parent=1 // pred_region
      %v73 = vld [vmem:[%s5] sm:$0x1]
      %v75 = vperm.slane %v73, 0
      %77 = vst [vmem:[#allocation8] sm:$0xff] %v75
    $region41: #{tpu_custom_call.1} parent=1 // pred_fallthru
      _
    %v78 = vld [vmem:[#allocation2] sm:$0xff]
    %v79 = vld [vmem:[#allocation5] sm:$0xff]
    %v80 = vld [vmem:[#allocation5 + $0x8] sm:$0xff]
    %v81 = vld [vmem:[#allocation5 + $0x10] sm:$0xff]
    %v82 = vld [vmem:[#allocation5 + $0x18] sm:$0xff]
    %v83 = vld [vmem:[#allocation5 + $0x20] sm:$0xff]
    %v84 = vld [vmem:[#allocation5 + $0x28] sm:$0xff]
    %v85 = vld [vmem:[#allocation5 + $0x30] sm:$0xff]
    %v86 = vld [vmem:[#allocation5 + $0x38] sm:$0xff]
    %v87 = vld [vmem:[#allocation5 + $0x40] sm:$0xff]
    %v88 = vld [vmem:[#allocation5 + $0x48] sm:$0xff]
    %v89 = vld [vmem:[#allocation5 + $0x50] sm:$0xff]
    %v90 = vld [vmem:[#allocation5 + $0x58] sm:$0xff]
    %v91 = vld [vmem:[#allocation5 + $0x60] sm:$0xff]
    %v92 = vld [vmem:[#allocation5 + $0x68] sm:$0xff]
    %v93 = vld [vmem:[#allocation5 + $0x70] sm:$0xff]
    %v94 = vld [vmem:[#allocation5 + $0x78] sm:$0xff]
    %v95 = vld [vmem:[%s3] sm:$0x1]
    %v97 = vperm.slane %v95, 0
    %v99 = vmul.f32 %v78, %v97
    %v100 = vld [vmem:[#allocation7] sm:$0xff]
    %v101 = vld [vmem:[#allocation7 + $0x8] sm:$0xff]
    %v102 = vld [vmem:[#allocation7 + $0x10] sm:$0xff]
    %v103 = vld [vmem:[#allocation7 + $0x18] sm:$0xff]
    %v104 = vld [vmem:[#allocation7 + $0x20] sm:$0xff]
    %v105 = vld [vmem:[#allocation7 + $0x28] sm:$0xff]
    %v106 = vld [vmem:[#allocation7 + $0x30] sm:$0xff]
    %v107 = vld [vmem:[#allocation7 + $0x38] sm:$0xff]
    %v108 = vld [vmem:[#allocation7 + $0x40] sm:$0xff]
    %v109 = vld [vmem:[#allocation7 + $0x48] sm:$0xff]
    %v110 = vld [vmem:[#allocation7 + $0x50] sm:$0xff]
    %v111 = vld [vmem:[#allocation7 + $0x58] sm:$0xff]
    %v112 = vld [vmem:[#allocation7 + $0x60] sm:$0xff]
    %v113 = vld [vmem:[#allocation7 + $0x68] sm:$0xff]
    %v114 = vld [vmem:[#allocation7 + $0x70] sm:$0xff]
    %v115 = vld [vmem:[#allocation7 + $0x78] sm:$0xff]
    %116 = vmatpush.xpose.msra.mxu0 %v115
    %117 = vmatpush.xpose.msra.mxu0 %v114
    %118 = vmatpush.xpose.msra.mxu0 %v113
    %119 = vmatpush.xpose.msra.mxu0 %v112
    %120 = vmatpush.xpose.msra.mxu0 %v111
    %121 = vmatpush.xpose.msra.mxu0 %v110
    %122 = vmatpush.xpose.msra.mxu0 %v109
    %123 = vmatpush.xpose.msra.mxu0 %v108
    %124 = vmatpush.xpose.msra.mxu0 %v107
    %125 = vmatpush.xpose.msra.mxu0 %v106
    %126 = vmatpush.xpose.msra.mxu0 %v105
    %127 = vmatpush.xpose.msra.mxu0 %v104
    %128 = vmatpush.xpose.msra.mxu0 %v103
    %129 = vmatpush.xpose.msra.mxu0 %v102
    %130 = vmatpush.xpose.msra.mxu0 %v101
    %131 = vmatpush.xpose.msra.mxu0 %v100
    %132 = vmatmul.f32.gmra.mxu0 %v99
    %v133 = vpop.f32.mrf.mxu0
    %v134 = vadd.f32 0.0, %v133
    %135 = vdwg.mxu0
    %v136 = vld [vmem:[#allocation8] sm:$0xff]
    %v137 = vld [vmem:[%s4] sm:$0x1]
    %v139 = vperm.slane %v137, 0
    %v141 = vmul.f32 %v134, %v139
    %142 = vmatpush.xpose.msra.mxu0 %v94
    %143 = vmatpush.xpose.msra.mxu0 %v93
    %144 = vmatpush.xpose.msra.mxu0 %v92
    %145 = vmatpush.xpose.msra.mxu0 %v91
    %146 = vmatpush.xpose.msra.mxu0 %v90
    %147 = vmatpush.xpose.msra.mxu0 %v89
    %148 = vmatpush.xpose.msra.mxu0 %v88
    %149 = vmatpush.xpose.msra.mxu0 %v87
    %150 = vmatpush.xpose.msra.mxu0 %v86
    %151 = vmatpush.xpose.msra.mxu0 %v85
    %152 = vmatpush.xpose.msra.mxu0 %v84
    %153 = vmatpush.xpose.msra.mxu0 %v83
    %154 = vmatpush.xpose.msra.mxu0 %v82
    %155 = vmatpush.xpose.msra.mxu0 %v81
    %156 = vmatpush.xpose.msra.mxu0 %v80
    %157 = vmatpush.xpose.msra.mxu0 %v79
    %158 = vmatmul.f32.gmra.mxu0 %v78
    %v159 = vpop.f32.mrf.mxu0
    %v160 = vadd.f32 %v141, %v159
    %161 = vdwg.mxu0
    %v162 = vadd.f32 %v136, %v160
    %163 = vst [vmem:[#allocation8] sm:$0xff] %v162
    // Predicated region
    $region42: #{tpu_custom_call.1} parent=1 // pred_check
      _
    $region43: #{tpu_custom_call.1} parent=1 // pred_check_branch
      %165 = sbr.rel (0) target = $region45
    $region44: #{tpu_custom_call.1} parent=1 // pred_region
      %167 = vsyncadd [#allocation4], 0
      %s169 = sshll.u32 [#allocation8], 4
      %s170 = int_to_ptr.vmem [resolvable:$true] %s169
      %s171 = sshll.u32 %s6, 4
      %s172 = int_to_ptr.hbm [resolvable:$true] %s171
      %174 = dma.vmem_to_hbm [thread:$0]  %s170, 128, %s172, [#allocation4]
    $region45: #{tpu_custom_call.1} parent=1 // pred_fallthru
      _
    // Predicated region
    $region46: #{tpu_custom_call.1} parent=1 // pred_check
      _
    $region47: #{tpu_custom_call.1} parent=1 // pred_check_branch
      %176 = sbr.rel (0) target = $region49
    $region48: #{tpu_custom_call.1} parent=1 // pred_region
      %178 = dma.done [#allocation4], 128
    $region49: #{tpu_custom_call.1} parent=1 // pred_fallthru
      _
    %179 = vsyncpa [#allocation3], 1
    %180 = vsyncpa [#allocation6], 1
    %181 = vsyncpa [#allocation4], 1

</llo_original>
